<compile_context>
chip_gen: v7x
topology: tpu7x:2x2x1
jax: 0.10.0
libtpu: 0.0.40
codegen_flags: <defaults>
</compile_context>

<pallas_src>
import functools

import jax
import jax.numpy as jnp
from jax import lax
from jax.experimental import pallas as pl
from jax.experimental.pallas import tpu as pltpu

EPS = 1e-5


def basic_block_kernel(x_ref, w1_ref, w2_ref, g1_ref, b1_ref, g2_ref, b2_ref,
                       out_ref, *, L, M):
    # x_ref  : (Cin,  Mp) lane-dense slab; columns j >= M (= N*L) are zero pad.
    # w1_ref : (3, Cmid, Cin)  per-tap conv1 weights (tap k multiplies x[:, j+k-1])
    # w2_ref : (3, Cout, Cmid) per-tap conv2 weights
    # g*/b*  : (C, 1) BN affine params
    # out_ref: (Cout, Mp)
    Cin, Mp = x_ref.shape
    inv_cnt = 1.0 / float(M)
    npad = float(Mp - M)

    # Boundary / validity masks, computed once (pure VPU work, no cross-lane).
    pos = lax.broadcasted_iota(jnp.int32, (1, Mp), 1)
    in_seq = pos % L
    valid = pos < M
    lmask = ((in_seq != 0) & valid).astype(jnp.float32)        # x[:, j-1] exists
    rmask = ((in_seq != (L - 1)) & valid).astype(jnp.float32)  # x[:, j+1] exists
    vmask = valid.astype(jnp.float32)

    def conv3(w_ref, x):
        # 3-tap conv1d(pad=1): three per-tap matmuls, shifts via XLU roll.
        xl = pltpu.roll(x, shift=1, axis=1) * lmask        # x[:, j-1]
        xr = pltpu.roll(x, shift=Mp - 1, axis=1) * rmask   # x[:, j+1]
        return (jnp.dot(w_ref[0], xl, preferred_element_type=jnp.float32)
                + jnp.dot(w_ref[1], x, preferred_element_type=jnp.float32)
                + jnp.dot(w_ref[2], xr, preferred_element_type=jnp.float32))

    def bn_fold(h, gamma, beta):
        # Train-mode BN folded to per-channel scale/shift.  Two-pass mean /
        # centered variance; pad columns of h are exactly zero, so their
        # (0 - m)^2 contribution is removed exactly with a scalar correction.
        m = jnp.sum(h, axis=1, keepdims=True) * inv_cnt
        d = h - m
        var = (jnp.sum(d * d, axis=1, keepdims=True) - npad * (m * m)) * inv_cnt
        var = jnp.maximum(var, 0.0)
        scale = gamma * lax.rsqrt(var + EPS)
        shift = beta - m * scale
        return scale, shift

    x = x_ref[...]                                           # (Cin, Mp)

    # ---- conv1 -> BN1 -> ReLU (pad columns forced back to exactly zero) ----
    h = conv3(w1_ref, x)                                     # (Cmid, Mp)
    sc1, sh1 = bn_fold(h, g1_ref[...], b1_ref[...])
    hn = jnp.maximum(h * sc1 + sh1, 0.0) * vmask

    # ---- conv2 -> BN2 -> +residual -> ReLU, one lane-dense store ----------
    o = conv3(w2_ref, hn)                                    # (Cout, Mp)
    sc2, sh2 = bn_fold(o, g2_ref[...], b2_ref[...])
    out_ref[...] = jnp.maximum(o * sc2 + sh2 + x_ref[...], 0.0).astype(out_ref.dtype)


@jax.jit
def basic_block(x_ncl, w1, w2, g1, b1, g2, b2):
    """x_ncl: (N, Cin, L) PyTorch Conv1d layout.
    w1: (Cmid, Cin, 3), w2: (Cout, Cmid, 3) PyTorch conv weight layout."""
    N, Cin, L = x_ncl.shape
    Cmid = w1.shape[0]
    Cout = w2.shape[0]
    assert Cout == Cin, "residual add requires planes * expansion == inplanes"

    M = N * L
    Mp = ((M + 127) // 128) * 128          # lane-dense, 128-aligned slab width

    # Layout plumbing only (no compute hoisted out of the kernel):
    # activations -> (C, Mp) slab, conv weights -> per-tap (3, C_out, C_in).
    x_slab = jnp.transpose(x_ncl, (1, 0, 2)).reshape(Cin, M).astype(jnp.float32)
    if Mp != M:
        x_slab = jnp.pad(x_slab, ((0, 0), (0, Mp - M)))
    w1t = jnp.transpose(w1, (2, 0, 1)).astype(jnp.float32)   # (3, Cmid, Cin)
    w2t = jnp.transpose(w2, (2, 0, 1)).astype(jnp.float32)   # (3, Cout, Cmid)

    kernel = functools.partial(basic_block_kernel, L=L, M=M)
    out_slab = pl.pallas_call(
        kernel,
        out_shape=jax.ShapeDtypeStruct((Cout, Mp), jnp.float32),
        in_specs=[pl.BlockSpec(memory_space=pltpu.MemorySpace.VMEM)] * 7,
        out_specs=pl.BlockSpec(memory_space=pltpu.MemorySpace.VMEM),
        # TODO(synk): for large N*L this whole-resident design should become a
        # tiled grid over the lane dim with cross-tile BN stat accumulation
        # (two-phase) and a "parallel" axis to use v7x's 2 TensorCores.
        compiler_params=pltpu.CompilerParams(vmem_limit_bytes=32 * 1024 * 1024),
    )(x_slab, w1t, w2t,
      g1.reshape(Cmid, 1).astype(jnp.float32),
      b1.reshape(Cmid, 1).astype(jnp.float32),
      g2.reshape(Cout, 1).astype(jnp.float32),
      b2.reshape(Cout, 1).astype(jnp.float32))

    return jnp.transpose(out_slab[:, :M].reshape(Cout, N, L), (1, 0, 2))


# ---------------- pure-JAX reference (mirrors the PyTorch forward) ----------------
def _conv1d(x_ncl, w):
    return lax.conv_general_dilated(
        x_ncl, w, window_strides=(1,), padding=((1, 1),),
        dimension_numbers=('NCH', 'OIH', 'NCH'))


def _bn_train(x_ncl, gamma, beta):
    m = jnp.mean(x_ncl, axis=(0, 2), keepdims=True)
    v = jnp.mean((x_ncl - m) ** 2, axis=(0, 2), keepdims=True)
    return (x_ncl - m) * lax.rsqrt(v + EPS) * gamma[None, :, None] + beta[None, :, None]


def basic_block_ref(x_ncl, w1, w2, g1, b1, g2, b2):
    out = _conv1d(x_ncl, w1)
    out = jnp.maximum(_bn_train(out, g1, b1), 0.0)
    out = _conv1d(out, w2)
    out = _bn_train(out, g2, b2)
    out = out + x_ncl
    return jnp.maximum(out, 0.0)
    # TODO(synk): BatchNorm running-stat buffer updates (training side effect) are
    # not reproduced; only the forward output is.


if __name__ == "__main__":
    # Small shapes consistent with the module: residual add needs
    # planes * expansion == inplanes.
    N, inplanes, planes, expansion, L = 2, 16, 8, 2, 32
    Cout = planes * expansion  # == inplanes

    key = jax.random.PRNGKey(0)
    kx, kw1, kw2, kg1, kb1, kg2, kb2 = jax.random.split(key, 7)

    x = jax.random.normal(kx, (N, inplanes, L), jnp.float32)

    # Deterministic parameter init (PyTorch shapes; conv bias=False).
    w1 = 0.1 * jax.random.normal(kw1, (planes, inplanes, 3), jnp.float32)
    w2 = 0.1 * jax.random.normal(kw2, (Cout, planes, 3), jnp.float32)
    g1 = 1.0 + 0.05 * jax.random.normal(kg1, (planes,), jnp.float32)
    b1 = 0.05 * jax.random.normal(kb1, (planes,), jnp.float32)
    g2 = 1.0 + 0.05 * jax.random.normal(kg2, (Cout,), jnp.float32)
    b2 = 0.05 * jax.random.normal(kb2, (Cout,), jnp.float32)

    out = basic_block(x, w1, w2, g1, b1, g2, b2)
    out = jax.block_until_ready(out)

    ref = basic_block_ref(x, w1, w2, g1, b1, g2, b2)
    assert out.shape == (N, Cout, L), out.shape
    assert jnp.allclose(out, ref, atol=1e-4, rtol=1e-4), float(
        jnp.max(jnp.abs(out - ref)))

    print("KERNEL_OK")
</pallas_src>

<mosaic_0001>
module attributes {stable_mosaic.version = 11 : i64} {
  func.func @basic_block_kernel(%arg0: memref<16x128xf32, #tpu.memory_space<vmem>>, %arg1: memref<3x8x16xf32, #tpu.memory_space<vmem>>, %arg2: memref<3x16x8xf32, #tpu.memory_space<vmem>>, %arg3: memref<8x1xf32, #tpu.memory_space<vmem>>, %arg4: memref<8x1xf32, #tpu.memory_space<vmem>>, %arg5: memref<16x1xf32, #tpu.memory_space<vmem>>, %arg6: memref<16x1xf32, #tpu.memory_space<vmem>>, %arg7: memref<16x128xf32, #tpu.memory_space<vmem>>) attributes {dimension_semantics = [], scalar_prefetch = 0 : i64, scratch_operands = 0 : i64, tpu.core_type = #tpu.core_type<tc>} {
    %0 = tpu.iota {dimensions = array<i32: 1>} : vector<1x128xi32>
    %c32_i32 = arith.constant 32 : i32
    %c0_i32 = arith.constant 0 : i32
    %1 = arith.cmpi eq, %c32_i32, %c0_i32 : i32
    %c1_i32 = arith.constant 1 : i32
    %2 = arith.select %1, %c1_i32, %c32_i32 : i32
    %3 = vector.broadcast %2 : i32 to vector<1x128xi32>
    %4 = arith.remsi %0, %3 : vector<1x128xi32>
    %c0_i32_0 = arith.constant 0 : i32
    %5 = vector.broadcast %c0_i32_0 : i32 to vector<1x128xi32>
    %6 = arith.cmpi ne, %4, %5 : vector<1x128xi32>
    %c0_i32_1 = arith.constant 0 : i32
    %7 = vector.broadcast %c0_i32_1 : i32 to vector<1x128xi32>
    %8 = arith.cmpi slt, %4, %7 : vector<1x128xi32>
    %c0_i32_2 = arith.constant 0 : i32
    %9 = arith.cmpi slt, %2, %c0_i32_2 : i32
    %10 = vector.broadcast %9 : i1 to vector<1x128xi1>
    %11 = vector.broadcast %10 : vector<1x128xi1> to vector<1x128xi1>
    %12 = arith.xori %8, %11 : vector<1x128xi1>
    %13 = arith.andi %12, %6 : vector<1x128xi1>
    %14 = vector.broadcast %2 : i32 to vector<1x128xi32>
    %15 = arith.addi %4, %14 : vector<1x128xi32>
    %16 = arith.select %13, %15, %4 : vector<1x128xi1>, vector<1x128xi32>
    %c64_i32 = arith.constant 64 : i32
    %17 = vector.broadcast %c64_i32 : i32 to vector<1x128xi32>
    %18 = arith.cmpi slt, %0, %17 : vector<1x128xi32>
    %c0_i32_3 = arith.constant 0 : i32
    %19 = vector.broadcast %c0_i32_3 : i32 to vector<1x128xi32>
    %20 = arith.cmpi ne, %16, %19 : vector<1x128xi32>
    %21 = arith.andi %20, %18 : vector<1x128xi1>
    %22 = arith.extui %21 : vector<1x128xi1> to vector<1x128xi32>
    %23 = arith.sitofp %22 : vector<1x128xi32> to vector<1x128xf32>
    %c31_i32 = arith.constant 31 : i32
    %24 = vector.broadcast %c31_i32 : i32 to vector<1x128xi32>
    %25 = arith.cmpi ne, %16, %24 : vector<1x128xi32>
    %26 = arith.andi %25, %18 : vector<1x128xi1>
    %27 = arith.extui %26 : vector<1x128xi1> to vector<1x128xi32>
    %28 = arith.sitofp %27 : vector<1x128xi32> to vector<1x128xf32>
    %29 = arith.extui %18 : vector<1x128xi1> to vector<1x128xi32>
    %30 = arith.sitofp %29 : vector<1x128xi32> to vector<1x128xf32>
    %c0 = arith.constant 0 : index
    %c0_4 = arith.constant 0 : index
    %31 = vector.load %arg0[%c0, %c0_4] : memref<16x128xf32, #tpu.memory_space<vmem>>, vector<16x128xf32>
    %c1_i32_5 = arith.constant 1 : i32
    %32 = tpu.dynamic_rotate %31 by %c1_i32_5 dim 1 : vector<16x128xf32>, i32 -> vector<16x128xf32>
    %33 = vector.broadcast %23 : vector<1x128xf32> to vector<16x128xf32>
    %34 = arith.mulf %32, %33 : vector<16x128xf32>
    %c127_i32 = arith.constant 127 : i32
    %35 = tpu.dynamic_rotate %31 by %c127_i32 dim 1 : vector<16x128xf32>, i32 -> vector<16x128xf32>
    %36 = vector.broadcast %28 : vector<1x128xf32> to vector<16x128xf32>
    %37 = arith.mulf %35, %36 : vector<16x128xf32>
    %c0_6 = arith.constant 0 : index
    %c0_7 = arith.constant 0 : index
    %c0_8 = arith.constant 0 : index
    %38 = vector.load %arg1[%c0_6, %c0_7, %c0_8] : memref<3x8x16xf32, #tpu.memory_space<vmem>>, vector<1x8x16xf32>
    %39 = vector.shape_cast %38 : vector<1x8x16xf32> to vector<8x16xf32>
    %cst = arith.constant dense<0.000000e+00> : vector<8x128xf32>
    %40 = tpu.matmul %39, %34, %cst {dimension_numbers = #tpu.dot_dimension_numbers<[1], [0], [0], [1], [0, 0, 1, 1], [], []>} : vector<8x16xf32>, vector<16x128xf32>, vector<8x128xf32> -> vector<8x128xf32>
    %c1 = arith.constant 1 : index
    %c0_9 = arith.constant 0 : index
    %c0_10 = arith.constant 0 : index
    %41 = vector.load %arg1[%c1, %c0_9, %c0_10] : memref<3x8x16xf32, #tpu.memory_space<vmem>>, vector<1x8x16xf32>
    %42 = vector.shape_cast %41 : vector<1x8x16xf32> to vector<8x16xf32>
    %cst_11 = arith.constant dense<0.000000e+00> : vector<8x128xf32>
    %43 = tpu.matmul %42, %31, %cst_11 {dimension_numbers = #tpu.dot_dimension_numbers<[1], [0], [0], [1], [0, 0, 1, 1], [], []>} : vector<8x16xf32>, vector<16x128xf32>, vector<8x128xf32> -> vector<8x128xf32>
    %44 = arith.addf %40, %43 : vector<8x128xf32>
    %c2 = arith.constant 2 : index
    %c0_12 = arith.constant 0 : index
    %c0_13 = arith.constant 0 : index
    %45 = vector.load %arg1[%c2, %c0_12, %c0_13] : memref<3x8x16xf32, #tpu.memory_space<vmem>>, vector<1x8x16xf32>
    %46 = vector.shape_cast %45 : vector<1x8x16xf32> to vector<8x16xf32>
    %cst_14 = arith.constant dense<0.000000e+00> : vector<8x128xf32>
    %47 = tpu.matmul %46, %37, %cst_14 {dimension_numbers = #tpu.dot_dimension_numbers<[1], [0], [0], [1], [0, 0, 1, 1], [], []>} : vector<8x16xf32>, vector<16x128xf32>, vector<8x128xf32> -> vector<8x128xf32>
    %48 = arith.addf %44, %47 : vector<8x128xf32>
    %c0_15 = arith.constant 0 : index
    %c0_16 = arith.constant 0 : index
    %49 = vector.load %arg3[%c0_15, %c0_16] : memref<8x1xf32, #tpu.memory_space<vmem>>, vector<8x1xf32>
    %c0_17 = arith.constant 0 : index
    %c0_18 = arith.constant 0 : index
    %50 = vector.load %arg4[%c0_17, %c0_18] : memref<8x1xf32, #tpu.memory_space<vmem>>, vector<8x1xf32>
    %cst_19 = arith.constant dense<0.000000e+00> : vector<8xf32>
    %51 = vector.multi_reduction <add>, %48, %cst_19 [1] : vector<8x128xf32> to vector<8xf32>
    %52 = vector.shape_cast %51 : vector<8xf32> to vector<8x1xf32>
    %cst_20 = arith.constant 1.562500e-02 : f32
    %53 = vector.broadcast %cst_20 : f32 to vector<8x1xf32>
    %54 = arith.mulf %52, %53 : vector<8x1xf32>
    %55 = vector.broadcast %54 : vector<8x1xf32> to vector<8x128xf32>
    %56 = arith.subf %48, %55 : vector<8x128xf32>
    %57 = arith.mulf %56, %56 : vector<8x128xf32>
    %cst_21 = arith.constant dense<0.000000e+00> : vector<8xf32>
    %58 = vector.multi_reduction <add>, %57, %cst_21 [1] : vector<8x128xf32> to vector<8xf32>
    %59 = vector.shape_cast %58 : vector<8xf32> to vector<8x1xf32>
    %60 = arith.mulf %54, %54 : vector<8x1xf32>
    %cst_22 = arith.constant 6.400000e+01 : f32
    %61 = vector.broadcast %cst_22 : f32 to vector<8x1xf32>
    %62 = arith.mulf %61, %60 : vector<8x1xf32>
    %63 = arith.subf %59, %62 : vector<8x1xf32>
    %cst_23 = arith.constant 1.562500e-02 : f32
    %64 = vector.broadcast %cst_23 : f32 to vector<8x1xf32>
    %65 = arith.mulf %63, %64 : vector<8x1xf32>
    %cst_24 = arith.constant 0.000000e+00 : f32
    %66 = vector.broadcast %cst_24 : f32 to vector<8x1xf32>
    %67 = arith.maximumf %65, %66 : vector<8x1xf32>
    %cst_25 = arith.constant 9.99999974E-6 : f32
    %68 = vector.broadcast %cst_25 : f32 to vector<8x1xf32>
    %69 = arith.addf %67, %68 : vector<8x1xf32>
    %70 = math.rsqrt %69 : vector<8x1xf32>
    %71 = arith.mulf %49, %70 : vector<8x1xf32>
    %72 = arith.mulf %54, %71 : vector<8x1xf32>
    %73 = arith.subf %50, %72 : vector<8x1xf32>
    %74 = vector.broadcast %71 : vector<8x1xf32> to vector<8x128xf32>
    %75 = arith.mulf %48, %74 : vector<8x128xf32>
    %76 = vector.broadcast %73 : vector<8x1xf32> to vector<8x128xf32>
    %77 = arith.addf %75, %76 : vector<8x128xf32>
    %cst_26 = arith.constant 0.000000e+00 : f32
    %78 = vector.broadcast %cst_26 : f32 to vector<8x128xf32>
    %79 = arith.maximumf %77, %78 : vector<8x128xf32>
    %80 = vector.broadcast %30 : vector<1x128xf32> to vector<8x128xf32>
    %81 = arith.mulf %79, %80 : vector<8x128xf32>
    %c1_i32_27 = arith.constant 1 : i32
    %82 = tpu.dynamic_rotate %81 by %c1_i32_27 dim 1 : vector<8x128xf32>, i32 -> vector<8x128xf32>
    %83 = vector.broadcast %23 : vector<1x128xf32> to vector<8x128xf32>
    %84 = arith.mulf %82, %83 : vector<8x128xf32>
    %c127_i32_28 = arith.constant 127 : i32
    %85 = tpu.dynamic_rotate %81 by %c127_i32_28 dim 1 : vector<8x128xf32>, i32 -> vector<8x128xf32>
    %86 = vector.broadcast %28 : vector<1x128xf32> to vector<8x128xf32>
    %87 = arith.mulf %85, %86 : vector<8x128xf32>
    %c0_29 = arith.constant 0 : index
    %c0_30 = arith.constant 0 : index
    %c0_31 = arith.constant 0 : index
    %88 = vector.load %arg2[%c0_29, %c0_30, %c0_31] : memref<3x16x8xf32, #tpu.memory_space<vmem>>, vector<1x16x8xf32>
    %89 = vector.shape_cast %88 : vector<1x16x8xf32> to vector<16x8xf32>
    %cst_32 = arith.constant dense<0.000000e+00> : vector<16x128xf32>
    %90 = tpu.matmul %89, %84, %cst_32 {dimension_numbers = #tpu.dot_dimension_numbers<[1], [0], [0], [1], [0, 0, 1, 1], [], []>} : vector<16x8xf32>, vector<8x128xf32>, vector<16x128xf32> -> vector<16x128xf32>
    %c1_33 = arith.constant 1 : index
    %c0_34 = arith.constant 0 : index
    %c0_35 = arith.constant 0 : index
    %91 = vector.load %arg2[%c1_33, %c0_34, %c0_35] : memref<3x16x8xf32, #tpu.memory_space<vmem>>, vector<1x16x8xf32>
    %92 = vector.shape_cast %91 : vector<1x16x8xf32> to vector<16x8xf32>
    %cst_36 = arith.constant dense<0.000000e+00> : vector<16x128xf32>
    %93 = tpu.matmul %92, %81, %cst_36 {dimension_numbers = #tpu.dot_dimension_numbers<[1], [0], [0], [1], [0, 0, 1, 1], [], []>} : vector<16x8xf32>, vector<8x128xf32>, vector<16x128xf32> -> vector<16x128xf32>
    %94 = arith.addf %90, %93 : vector<16x128xf32>
    %c2_37 = arith.constant 2 : index
    %c0_38 = arith.constant 0 : index
    %c0_39 = arith.constant 0 : index
    %95 = vector.load %arg2[%c2_37, %c0_38, %c0_39] : memref<3x16x8xf32, #tpu.memory_space<vmem>>, vector<1x16x8xf32>
    %96 = vector.shape_cast %95 : vector<1x16x8xf32> to vector<16x8xf32>
    %cst_40 = arith.constant dense<0.000000e+00> : vector<16x128xf32>
    %97 = tpu.matmul %96, %87, %cst_40 {dimension_numbers = #tpu.dot_dimension_numbers<[1], [0], [0], [1], [0, 0, 1, 1], [], []>} : vector<16x8xf32>, vector<8x128xf32>, vector<16x128xf32> -> vector<16x128xf32>
    %98 = arith.addf %94, %97 : vector<16x128xf32>
    %c0_41 = arith.constant 0 : index
    %c0_42 = arith.constant 0 : index
    %99 = vector.load %arg5[%c0_41, %c0_42] : memref<16x1xf32, #tpu.memory_space<vmem>>, vector<16x1xf32>
    %c0_43 = arith.constant 0 : index
    %c0_44 = arith.constant 0 : index
    %100 = vector.load %arg6[%c0_43, %c0_44] : memref<16x1xf32, #tpu.memory_space<vmem>>, vector<16x1xf32>
    %cst_45 = arith.constant dense<0.000000e+00> : vector<16xf32>
    %101 = vector.multi_reduction <add>, %98, %cst_45 [1] : vector<16x128xf32> to vector<16xf32>
    %102 = vector.shape_cast %101 : vector<16xf32> to vector<16x1xf32>
    %cst_46 = arith.constant 1.562500e-02 : f32
    %103 = vector.broadcast %cst_46 : f32 to vector<16x1xf32>
    %104 = arith.mulf %102, %103 : vector<16x1xf32>
    %105 = vector.broadcast %104 : vector<16x1xf32> to vector<16x128xf32>
    %106 = arith.subf %98, %105 : vector<16x128xf32>
    %107 = arith.mulf %106, %106 : vector<16x128xf32>
    %cst_47 = arith.constant dense<0.000000e+00> : vector<16xf32>
    %108 = vector.multi_reduction <add>, %107, %cst_47 [1] : vector<16x128xf32> to vector<16xf32>
    %109 = vector.shape_cast %108 : vector<16xf32> to vector<16x1xf32>
    %110 = arith.mulf %104, %104 : vector<16x1xf32>
    %cst_48 = arith.constant 6.400000e+01 : f32
    %111 = vector.broadcast %cst_48 : f32 to vector<16x1xf32>
    %112 = arith.mulf %111, %110 : vector<16x1xf32>
    %113 = arith.subf %109, %112 : vector<16x1xf32>
    %cst_49 = arith.constant 1.562500e-02 : f32
    %114 = vector.broadcast %cst_49 : f32 to vector<16x1xf32>
    %115 = arith.mulf %113, %114 : vector<16x1xf32>
    %cst_50 = arith.constant 0.000000e+00 : f32
    %116 = vector.broadcast %cst_50 : f32 to vector<16x1xf32>
    %117 = arith.maximumf %115, %116 : vector<16x1xf32>
    %cst_51 = arith.constant 9.99999974E-6 : f32
    %118 = vector.broadcast %cst_51 : f32 to vector<16x1xf32>
    %119 = arith.addf %117, %118 : vector<16x1xf32>
    %120 = math.rsqrt %119 : vector<16x1xf32>
    %121 = arith.mulf %99, %120 : vector<16x1xf32>
    %122 = arith.mulf %104, %121 : vector<16x1xf32>
    %123 = arith.subf %100, %122 : vector<16x1xf32>
    %124 = vector.broadcast %121 : vector<16x1xf32> to vector<16x128xf32>
    %125 = arith.mulf %98, %124 : vector<16x128xf32>
    %126 = vector.broadcast %123 : vector<16x1xf32> to vector<16x128xf32>
    %127 = arith.addf %125, %126 : vector<16x128xf32>
    %c0_52 = arith.constant 0 : index
    %c0_53 = arith.constant 0 : index
    %128 = vector.load %arg0[%c0_52, %c0_53] : memref<16x128xf32, #tpu.memory_space<vmem>>, vector<16x128xf32>
    %129 = arith.addf %127, %128 : vector<16x128xf32>
    %cst_54 = arith.constant 0.000000e+00 : f32
    %130 = vector.broadcast %cst_54 : f32 to vector<16x128xf32>
    %131 = arith.maximumf %129, %130 : vector<16x128xf32>
    %c0_55 = arith.constant 0 : index
    %c0_56 = arith.constant 0 : index
    %132 = vector.load %arg7[%c0_55, %c0_56] : memref<16x128xf32, #tpu.memory_space<vmem>>, vector<16x128xf32>
    tpu.vector_store %arg7[%c0_55, %c0_56], %131 {strides = array<i32>} : memref<16x128xf32, #tpu.memory_space<vmem>>, vector<16x128xf32>,
    return
  }
}

</mosaic_0001>

<llo_original>
// kernel: basic_block.1
$region0: #{basic_block.1}
  #allocation0 [shape = 'u32[]', space=smem, size = 0x4, offset = 0x4, fixed_abs, tag = 'smem constant byte address 0x4 - core index']
  #allocation1 [shape = 'u32[144,128]{1,0:T(1,128)}', space=vmem, size = 0x12000, scoped, tag = 'internal scratch']
  %s0 = inlined_call_operand.vmem [shape: f32[16,128], index: 0, kind: input, shape index: {}]
  %s1 = inlined_call_operand.vmem [shape: f32[3,8,16], index: 1, kind: input, shape index: {}]
  %s2 = inlined_call_operand.vmem [shape: f32[3,16,8], index: 2, kind: input, shape index: {}]
  %s3 = inlined_call_operand.vmem [shape: f32[8,1], index: 3, kind: input, shape index: {}]
  %s4 = inlined_call_operand.vmem [shape: f32[8,1], index: 4, kind: input, shape index: {}]
  %s5 = inlined_call_operand.vmem [shape: f32[16,1], index: 5, kind: input, shape index: {}]
  %s6 = inlined_call_operand.vmem [shape: f32[16,1], index: 6, kind: input, shape index: {}]
  %s7 = inlined_call_operand.vmem [shape: f32[16,128], index: 7, kind: output, shape index: {}]
  %s8 = sld [smem:[#allocation0]]
  $region38: #{basic_block.1} parent=0
    _
  %s10 = ssub.s32 1, %s8
  %s11 = scalar_select 0, %s10, %s8
  // Predicated region
  $region2: #{basic_block.1} parent=0 // pred_check
    _
  $region3: #{basic_block.1} parent=0 // pred_check_branch
    %13 = sbr.rel (0) target = $region5
  $region4: #{basic_block.1} parent=0 // pred_region
    _
  $region5: #{basic_block.1} parent=0 // pred_fallthru
    _
  // Predicated region
  $region6: #{basic_block.1} parent=0 // pred_check
    _
  $region7: #{basic_block.1} parent=0 // pred_check_branch
    %15 = sbr.rel (0) target = $region9
  $region8: #{basic_block.1} parent=0 // pred_region
    _
  $region9: #{basic_block.1} parent=0 // pred_fallthru
    _
  // Predicated region
  $region10: #{basic_block.1} parent=0 // pred_check
    _
  $region11: #{basic_block.1} parent=0 // pred_check_branch
    %17 = sbr.rel (0) target = $region13
  $region12: #{basic_block.1} parent=0 // pred_region
    _
  $region13: #{basic_block.1} parent=0 // pred_fallthru
    _
  // Predicated region
  $region14: #{basic_block.1} parent=0 // pred_check
    _
  $region15: #{basic_block.1} parent=0 // pred_check_branch
    %19 = sbr.rel (0) target = $region17
  $region16: #{basic_block.1} parent=0 // pred_region
    _
  $region17: #{basic_block.1} parent=0 // pred_fallthru
    _
  // Predicated region
  $region18: #{basic_block.1} parent=0 // pred_check
    _
  $region19: #{basic_block.1} parent=0 // pred_check_branch
    %21 = sbr.rel (0) target = $region21
  $region20: #{basic_block.1} parent=0 // pred_region
    _
  $region21: #{basic_block.1} parent=0 // pred_fallthru
    _
  // Predicated region
  $region22: #{basic_block.1} parent=0 // pred_check
    _
  $region23: #{basic_block.1} parent=0 // pred_check_branch
    %23 = sbr.rel (0) target = $region25
  $region24: #{basic_block.1} parent=0 // pred_region
    _
  $region25: #{basic_block.1} parent=0 // pred_fallthru
    _
  // Predicated region
  $region26: #{basic_block.1} parent=0 // pred_check
    _
  $region27: #{basic_block.1} parent=0 // pred_check_branch
    %25 = sbr.rel (0) target = $region29
  $region28: #{basic_block.1} parent=0 // pred_region
    _
  $region29: #{basic_block.1} parent=0 // pred_fallthru
    _
  %v26 = vlaneseq
  %v27 = vand.u32 %v26, 127
  %vm28 = vcmp.lt.s32.totalorder %v27, 0
  %v29 = vsub.s32 0, %v27
  %v30 = vsel %vm28, %v29, %v27
  %v31 = vshrl.u32 %v30, 5
  %v32 = vand.u32 %v30, 31
  %v33 = vsub.s32 0, %v32
  %v34 = vsel %vm28, %v33, %v32
  %vm35 = vcmp.ne.s32.totalorder %v34, 0
  %vm36 = vcmp.lt.s32.totalorder %v34, 0
  %vm37 = vmand %vm36, %vm35
  %v38 = vadd.s32 %v34, 32
  %v39 = vsel %vm37, %v38, %v34
  %vm40 = vcmp.lt.s32.totalorder %v27, 64
  %vm41 = vcmp.ne.s32.totalorder %v39, 0
  %vm42 = vmand %vm41, %vm40
  %v43 = vsel %vm42, 1, 0
  %v44 = vcvt.s32.f32 %v43
  %vm45 = vcmp.ne.s32.totalorder %v39, 31
  %vm46 = vmand %vm45, %vm40
  %v47 = vsel %vm46, 1, 0
  %v48 = vcvt.s32.f32 %v47
  %v49 = vsel %vm40, 1, 0
  %v50 = vcvt.s32.f32 %v49
  %v51 = vld [vmem:[%s0] sm:$0xff]
  %v52 = vld [vmem:[%s0 + $0x8] sm:$0xff]
  %53 = vrot.lane.b32.xlu0 %v51, 1
  %v54 = vpop.permute.xlu0 %53
  %55 = vrot.lane.b32.xlu0 %v52, 1
  %v56 = vpop.permute.xlu0 %55
  %v57 = vmul.f32 %v54, %v44
  %v58 = vmul.f32 %v56, %v44
  %59 = vrot.lane.b32.xlu0 %v51, 127
  %v60 = vpop.permute.xlu0 %59
  %61 = vrot.lane.b32.xlu0 %v52, 127
  %v62 = vpop.permute.xlu0 %61
  %v63 = vmul.f32 %v60, %v48
  %v64 = vmul.f32 %v62, %v48
  %v65 = vld [vmem:[%s1] sm:$0xff]
  %s66 = scalar_lea.vmem %s1, 8
  %v67 = vld [vmem:[%s66] sm:$0xff]
  %vm68 = vcmask 130048
  %v70 = vsel %vm68, %v67, 0
  %72 = vmatprep.subr.mxu0 0.0
  %73 = vmatpush1.msra.mxu0 %v51
  %74 = vmatprep.subr.mxu0 0.0
  %75 = vmatpush1.msra.mxu0 %v52
  %76 = vmatprep.subr.mxu0 0.0
  %77 = vmatpush1.msra.mxu0 0.0
  %78 = vmatprep.subr.mxu0 0.0
  %79 = vmatpush1.msra.mxu0 0.0
  %80 = vmatprep.subr.mxu0 0.0
  %81 = vmatpush1.msra.mxu0 0.0
  %82 = vmatprep.subr.mxu0 0.0
  %83 = vmatpush1.msra.mxu0 0.0
  %84 = vmatprep.subr.mxu0 0.0
  %85 = vmatpush1.msra.mxu0 0.0
  %86 = vmatprep.subr.mxu0 0.0
  %87 = vmatpush1.msra.mxu0 0.0
  %88 = vmatprep.subr.mxu0 0.0
  %89 = vmatpush1.msra.mxu0 0.0
  %90 = vmatprep.subr.mxu0 0.0
  %91 = vmatpush1.msra.mxu0 0.0
  %92 = vmatprep.subr.mxu0 0.0
  %93 = vmatpush1.msra.mxu0 0.0
  %94 = vmatprep.subr.mxu0 0.0
  %95 = vmatpush1.msra.mxu0 0.0
  %96 = vmatprep.subr.mxu0 0.0
  %97 = vmatpush1.msra.mxu0 0.0
  %98 = vmatprep.subr.mxu0 0.0
  %99 = vmatpush1.msra.mxu0 0.0
  %100 = vmatprep.subr.mxu0 0.0
  %101 = vmatpush1.msra.mxu0 0.0
  %102 = vmatprep.subr.mxu0 0.0
  %103 = vmatpush1.msra.mxu0 0.0
  %104 = vmatprep.subr.mxu0 0.0
  %105 = vmatpush1.msra.mxu0 0.0
  %106 = vmatprep.subr.mxu0 0.0
  %107 = vmatpush1.msra.mxu0 0.0
  %108 = vmatprep.subr.mxu0 0.0
  %109 = vmatpush1.msra.mxu0 0.0
  %110 = vmatprep.subr.mxu0 0.0
  %111 = vmatpush1.msra.mxu0 0.0
  %112 = vmatprep.subr.mxu0 0.0
  %113 = vmatpush1.msra.mxu0 0.0
  %114 = vmatprep.subr.mxu0 0.0
  %115 = vmatpush1.msra.mxu0 0.0
  %116 = vmatprep.subr.mxu0 0.0
  %117 = vmatpush1.msra.mxu0 0.0
  %118 = vmatprep.subr.mxu0 0.0
  %119 = vmatpush1.msra.mxu0 0.0
  %120 = vmatprep.subr.mxu0 0.0
  %121 = vmatpush1.msra.mxu0 0.0
  %122 = vmatprep.subr.mxu0 0.0
  %123 = vmatpush1.msra.mxu0 0.0
  %124 = vmatprep.subr.mxu0 0.0
  %125 = vmatpush1.msra.mxu0 0.0
  %126 = vmatprep.subr.mxu0 0.0
  %127 = vmatpush1.msra.mxu0 0.0
  %128 = vmatprep.subr.mxu0 0.0
  %129 = vmatpush1.msra.mxu0 0.0
  %130 = vmatprep.subr.mxu0 0.0
  %131 = vmatpush1.msra.mxu0 0.0
  %132 = vmatprep.subr.mxu0 0.0
  %133 = vmatpush1.msra.mxu0 0.0
  %134 = vmatprep.subr.mxu0 0.0
  %135 = vmatpush1.msra.mxu0 0.0
  %136 = vmatprep.mubr.f32.mxu0 0.0
  %137 = vmatmul.mubr.f32.gmra.mrb[0].mxu0 %v70
  %v138 = vpop.f32.mrb[0].mxu0
  %v139 = vadd.f32 0.0, %v138
  %v140 = vpop.f32.mrb[0].mxu0
  %141 = vdwg.mxu0
  %v143 = vsel %vm68, %v65, 0
  %145 = vmatprep.subr.mxu0 0.0
  %146 = vmatpush1.msra.mxu0 %v57
  %147 = vmatprep.subr.mxu0 0.0
  %148 = vmatpush1.msra.mxu0 %v58
  %149 = vmatprep.subr.mxu0 0.0
  %150 = vmatpush1.msra.mxu0 0.0
  %151 = vmatprep.subr.mxu0 0.0
  %152 = vmatpush1.msra.mxu0 0.0
  %153 = vmatprep.subr.mxu0 0.0
  %154 = vmatpush1.msra.mxu0 0.0
  %155 = vmatprep.subr.mxu0 0.0
  %156 = vmatpush1.msra.mxu0 0.0
  %157 = vmatprep.subr.mxu0 0.0
  %158 = vmatpush1.msra.mxu0 0.0
  %159 = vmatprep.subr.mxu0 0.0
  %160 = vmatpush1.msra.mxu0 0.0
  %161 = vmatprep.subr.mxu0 0.0
  %162 = vmatpush1.msra.mxu0 0.0
  %163 = vmatprep.subr.mxu0 0.0
  %164 = vmatpush1.msra.mxu0 0.0
  %165 = vmatprep.subr.mxu0 0.0
  %166 = vmatpush1.msra.mxu0 0.0
  %167 = vmatprep.subr.mxu0 0.0
  %168 = vmatpush1.msra.mxu0 0.0
  %169 = vmatprep.subr.mxu0 0.0
  %170 = vmatpush1.msra.mxu0 0.0
  %171 = vmatprep.subr.mxu0 0.0
  %172 = vmatpush1.msra.mxu0 0.0
  %173 = vmatprep.subr.mxu0 0.0
  %174 = vmatpush1.msra.mxu0 0.0
  %175 = vmatprep.subr.mxu0 0.0
  %176 = vmatpush1.msra.mxu0 0.0
  %177 = vmatprep.subr.mxu0 0.0
  %178 = vmatpush1.msra.mxu0 0.0
  %179 = vmatprep.subr.mxu0 0.0
  %180 = vmatpush1.msra.mxu0 0.0
  %181 = vmatprep.subr.mxu0 0.0
  %182 = vmatpush1.msra.mxu0 0.0
  %183 = vmatprep.subr.mxu0 0.0
  %184 = vmatpush1.msra.mxu0 0.0
  %185 = vmatprep.subr.mxu0 0.0
  %186 = vmatpush1.msra.mxu0 0.0
  %187 = vmatprep.subr.mxu0 0.0
  %188 = vmatpush1.msra.mxu0 0.0
  %189 = vmatprep.subr.mxu0 0.0
  %190 = vmatpush1.msra.mxu0 0.0
  %191 = vmatprep.subr.mxu0 0.0
  %192 = vmatpush1.msra.mxu0 0.0
  %193 = vmatprep.subr.mxu0 0.0
  %194 = vmatpush1.msra.mxu0 0.0
  %195 = vmatprep.subr.mxu0 0.0
  %196 = vmatpush1.msra.mxu0 0.0
  %197 = vmatprep.subr.mxu0 0.0
  %198 = vmatpush1.msra.mxu0 0.0
  %199 = vmatprep.subr.mxu0 0.0
  %200 = vmatpush1.msra.mxu0 0.0
  %201 = vmatprep.subr.mxu0 0.0
  %202 = vmatpush1.msra.mxu0 0.0
  %203 = vmatprep.subr.mxu0 0.0
  %204 = vmatpush1.msra.mxu0 0.0
  %205 = vmatprep.subr.mxu0 0.0
  %206 = vmatpush1.msra.mxu0 0.0
  %207 = vmatprep.subr.mxu0 0.0
  %208 = vmatpush1.msra.mxu0 0.0
  %209 = vmatprep.mubr.f32.mxu0 0.0
  %210 = vmatmul.mubr.f32.gmra.mrb[0].mxu0 %v143
  %v211 = vpop.f32.mrb[0].mxu0
  %v212 = vadd.f32 %v139, %v211
  %v213 = vpop.f32.mrb[0].mxu0
  %214 = vdwg.mxu0
  %s215 = scalar_lea.vmem %s1, 16
  %v216 = vld [vmem:[%s215] sm:$0xff]
  %v218 = vsel %vm68, %v216, 0
  %220 = vmatprep.subr.mxu0 0.0
  %221 = vmatpush1.msra.mxu0 %v63
  %222 = vmatprep.subr.mxu0 0.0
  %223 = vmatpush1.msra.mxu0 %v64
  %224 = vmatprep.subr.mxu0 0.0
  %225 = vmatpush1.msra.mxu0 0.0
  %226 = vmatprep.subr.mxu0 0.0
  %227 = vmatpush1.msra.mxu0 0.0
  %228 = vmatprep.subr.mxu0 0.0
  %229 = vmatpush1.msra.mxu0 0.0
  %230 = vmatprep.subr.mxu0 0.0
  %231 = vmatpush1.msra.mxu0 0.0
  %232 = vmatprep.subr.mxu0 0.0
  %233 = vmatpush1.msra.mxu0 0.0
  %234 = vmatprep.subr.mxu0 0.0
  %235 = vmatpush1.msra.mxu0 0.0
  %236 = vmatprep.subr.mxu0 0.0
  %237 = vmatpush1.msra.mxu0 0.0
  %238 = vmatprep.subr.mxu0 0.0
  %239 = vmatpush1.msra.mxu0 0.0
  %240 = vmatprep.subr.mxu0 0.0
  %241 = vmatpush1.msra.mxu0 0.0
  %242 = vmatprep.subr.mxu0 0.0
  %243 = vmatpush1.msra.mxu0 0.0
  %244 = vmatprep.subr.mxu0 0.0
  %245 = vmatpush1.msra.mxu0 0.0
  %246 = vmatprep.subr.mxu0 0.0
  %247 = vmatpush1.msra.mxu0 0.0
  %248 = vmatprep.subr.mxu0 0.0
  %249 = vmatpush1.msra.mxu0 0.0
  %250 = vmatprep.subr.mxu0 0.0
  %251 = vmatpush1.msra.mxu0 0.0
  %252 = vmatprep.subr.mxu0 0.0
  %253 = vmatpush1.msra.mxu0 0.0
  %254 = vmatprep.subr.mxu0 0.0
  %255 = vmatpush1.msra.mxu0 0.0
  %256 = vmatprep.subr.mxu0 0.0
  %257 = vmatpush1.msra.mxu0 0.0
  %258 = vmatprep.subr.mxu0 0.0
  %259 = vmatpush1.msra.mxu0 0.0
  %260 = vmatprep.subr.mxu0 0.0
  %261 = vmatpush1.msra.mxu0 0.0
  %262 = vmatprep.subr.mxu0 0.0
  %263 = vmatpush1.msra.mxu0 0.0
  %264 = vmatprep.subr.mxu0 0.0
  %265 = vmatpush1.msra.mxu0 0.0
  %266 = vmatprep.subr.mxu0 0.0
  %267 = vmatpush1.msra.mxu0 0.0
  %268 = vmatprep.subr.mxu0 0.0
  %269 = vmatpush1.msra.mxu0 0.0
  %270 = vmatprep.subr.mxu0 0.0
  %271 = vmatpush1.msra.mxu0 0.0
  %272 = vmatprep.subr.mxu0 0.0
  %273 = vmatpush1.msra.mxu0 0.0
  %274 = vmatprep.subr.mxu0 0.0
  %275 = vmatpush1.msra.mxu0 0.0
  %276 = vmatprep.subr.mxu0 0.0
  %277 = vmatpush1.msra.mxu0 0.0
  %278 = vmatprep.subr.mxu0 0.0
  %279 = vmatpush1.msra.mxu0 0.0
  %280 = vmatprep.subr.mxu0 0.0
  %281 = vmatpush1.msra.mxu0 0.0
  %282 = vmatprep.subr.mxu0 0.0
  %283 = vmatpush1.msra.mxu0 0.0
  %284 = vmatprep.mubr.f32.mxu0 0.0
  %285 = vmatmul.mubr.f32.gmra.mrb[0].mxu0 %v218
  %v286 = vpop.f32.mrb[0].mxu0
  %v287 = vadd.f32 0.0, %v286
  %v288 = vpop.f32.mrb[0].mxu0
  %289 = vdwg.mxu0
  %v290 = vadd.f32 %v212, %v287
  %v291 = vld [vmem:[%s3] sm:$0xff]
  %v292 = vld [vmem:[%s4] sm:$0xff]
  %293 = vadd.xlane.f32.xlu0 %v290
  %v294 = vpop.xlane.xlu0 %293
  %v295 = vmul.f32 %v294, 0.015625
  %v296 = vsub.f32 %v290, %v295
  %v297 = vmul.f32 %v296, %v296
  %298 = vadd.xlane.f32.xlu0 %v297
  %v299 = vpop.xlane.xlu0 %298
  %v300 = vmul.f32 %v295, %v295
  %v301 = vmul.f32 %v300, 64.0
  %v302 = vsub.f32 %v299, %v301
  %v303 = vmul.f32 %v302, 0.015625
  %v304 = vmax.f32 %v303, 0.0
  %v305 = vadd.f32 %v304, 1e-05
  %v306 = vrsqrt.pop %v305
  %v307 = vmul.f32 %v291, %v306
  %v308 = vmul.f32 %v295, %v307
  %v309 = vsub.f32 %v292, %v308
  %311 = vset.pattern.permute.xlu0 0
  %312 = vperm.xlu0 %311, %v307
  %v313 = vpop.permute.xlu0 %312
  %v315 = vmul.f32 %v290, %v313
  %317 = vset.pattern.permute.xlu0 0
  %318 = vperm.xlu0 %317, %v309
  %v319 = vpop.permute.xlu0 %318
  %v321 = vadd.f32 %v315, %v319
  %v322 = vmax.f32 %v321, 0.0
  %v323 = vmul.f32 %v322, %v50
  %324 = vrot.lane.b32.xlu0 %v323, 1
  %v325 = vpop.permute.xlu0 %324
  %v326 = vmul.f32 %v325, %v44
  %327 = vrot.lane.b32.xlu0 %v323, 127
  %v328 = vpop.permute.xlu0 %327
  %v329 = vmul.f32 %v328, %v48
  %v330 = vld [vmem:[%s2] sm:$0xff]
  %v331 = vld [vmem:[%s2 + $0x8] sm:$0xff]
  %s332 = scalar_lea.vmem %s2, 16
  %v333 = vld [vmem:[%s332] sm:$0xff]
  %v334 = vld [vmem:[%s332 + $0x8] sm:$0xff]
  %vm335 = vcmask 64512
  %v337 = vsel %vm335, %v333, 0
  %v340 = vsel %vm335, %v334, 0
  %342 = vmatprep.subr.mxu0 0.0
  %343 = vmatpush1.msra.mxu0 %v323
  %344 = vmatprep.subr.mxu0 0.0
  %345 = vmatpush1.msra.mxu0 0.0
  %346 = vmatprep.subr.mxu0 0.0
  %347 = vmatpush1.msra.mxu0 0.0
  %348 = vmatprep.subr.mxu0 0.0
  %349 = vmatpush1.msra.mxu0 0.0
  %350 = vmatprep.subr.mxu0 0.0
  %351 = vmatpush1.msra.mxu0 0.0
  %352 = vmatprep.subr.mxu0 0.0
  %353 = vmatpush1.msra.mxu0 0.0
  %354 = vmatprep.subr.mxu0 0.0
  %355 = vmatpush1.msra.mxu0 0.0
  %356 = vmatprep.subr.mxu0 0.0
  %357 = vmatpush1.msra.mxu0 0.0
  %358 = vmatprep.subr.mxu0 0.0
  %359 = vmatpush1.msra.mxu0 0.0
  %360 = vmatprep.subr.mxu0 0.0
  %361 = vmatpush1.msra.mxu0 0.0
  %362 = vmatprep.subr.mxu0 0.0
  %363 = vmatpush1.msra.mxu0 0.0
  %364 = vmatprep.subr.mxu0 0.0
  %365 = vmatpush1.msra.mxu0 0.0
  %366 = vmatprep.subr.mxu0 0.0
  %367 = vmatpush1.msra.mxu0 0.0
  %368 = vmatprep.subr.mxu0 0.0
  %369 = vmatpush1.msra.mxu0 0.0
  %370 = vmatprep.subr.mxu0 0.0
  %371 = vmatpush1.msra.mxu0 0.0
  %372 = vmatprep.subr.mxu0 0.0
  %373 = vmatpush1.msra.mxu0 0.0
  %374 = vmatprep.subr.mxu0 0.0
  %375 = vmatpush1.msra.mxu0 0.0
  %376 = vmatprep.subr.mxu0 0.0
  %377 = vmatpush1.msra.mxu0 0.0
  %378 = vmatprep.subr.mxu0 0.0
  %379 = vmatpush1.msra.mxu0 0.0
  %380 = vmatprep.subr.mxu0 0.0
  %381 = vmatpush1.msra.mxu0 0.0
  %382 = vmatprep.subr.mxu0 0.0
  %383 = vmatpush1.msra.mxu0 0.0
  %384 = vmatprep.subr.mxu0 0.0
  %385 = vmatpush1.msra.mxu0 0.0
  %386 = vmatprep.subr.mxu0 0.0
  %387 = vmatpush1.msra.mxu0 0.0
  %388 = vmatprep.subr.mxu0 0.0
  %389 = vmatpush1.msra.mxu0 0.0
  %390 = vmatprep.subr.mxu0 0.0
  %391 = vmatpush1.msra.mxu0 0.0
  %392 = vmatprep.subr.mxu0 0.0
  %393 = vmatpush1.msra.mxu0 0.0
  %394 = vmatprep.subr.mxu0 0.0
  %395 = vmatpush1.msra.mxu0 0.0
  %396 = vmatprep.subr.mxu0 0.0
  %397 = vmatpush1.msra.mxu0 0.0
  %398 = vmatprep.subr.mxu0 0.0
  %399 = vmatpush1.msra.mxu0 0.0
  %400 = vmatprep.subr.mxu0 0.0
  %401 = vmatpush1.msra.mxu0 0.0
  %402 = vmatprep.subr.mxu0 0.0
  %403 = vmatpush1.msra.mxu0 0.0
  %404 = vmatprep.subr.mxu0 0.0
  %405 = vmatpush1.msra.mxu0 0.0
  %406 = vmatprep.mubr.f32.mxu0 0.0
  %407 = vmatmul.mubr.f32.gmra.mrb[0].mxu0 %v337
  %v408 = vpop.f32.mrb[0].mxu0
  %v409 = vadd.f32 0.0, %v408
  %v410 = vpop.f32.mrb[0].mxu0
  %411 = vmatprep.mubr.f32.mxu0 0.0
  %412 = vmatmul.mubr.f32.gmra.mrb[0].mxu0 %v340
  %v413 = vpop.f32.mrb[0].mxu0
  %v414 = vadd.f32 0.0, %v413
  %v415 = vpop.f32.mrb[0].mxu0
  %416 = vdwg.mxu0
  %v418 = vsel %vm335, %v330, 0
  %v421 = vsel %vm335, %v331, 0
  %423 = vmatprep.subr.mxu0 0.0
  %424 = vmatpush1.msra.mxu0 %v326
  %425 = vmatprep.subr.mxu0 0.0
  %426 = vmatpush1.msra.mxu0 0.0
  %427 = vmatprep.subr.mxu0 0.0
  %428 = vmatpush1.msra.mxu0 0.0
  %429 = vmatprep.subr.mxu0 0.0
  %430 = vmatpush1.msra.mxu0 0.0
  %431 = vmatprep.subr.mxu0 0.0
  %432 = vmatpush1.msra.mxu0 0.0
  %433 = vmatprep.subr.mxu0 0.0
  %434 = vmatpush1.msra.mxu0 0.0
  %435 = vmatprep.subr.mxu0 0.0
  %436 = vmatpush1.msra.mxu0 0.0
  %437 = vmatprep.subr.mxu0 0.0
  %438 = vmatpush1.msra.mxu0 0.0
  %439 = vmatprep.subr.mxu0 0.0
  %440 = vmatpush1.msra.mxu0 0.0
  %441 = vmatprep.subr.mxu0 0.0
  %442 = vmatpush1.msra.mxu0 0.0
  %443 = vmatprep.subr.mxu0 0.0
  %444 = vmatpush1.msra.mxu0 0.0
  %445 = vmatprep.subr.mxu0 0.0
  %446 = vmatpush1.msra.mxu0 0.0
  %447 = vmatprep.subr.mxu0 0.0
  %448 = vmatpush1.msra.mxu0 0.0
  %449 = vmatprep.subr.mxu0 0.0
  %450 = vmatpush1.msra.mxu0 0.0
  %451 = vmatprep.subr.mxu0 0.0
  %452 = vmatpush1.msra.mxu0 0.0
  %453 = vmatprep.subr.mxu0 0.0
  %454 = vmatpush1.msra.mxu0 0.0
  %455 = vmatprep.subr.mxu0 0.0
  %456 = vmatpush1.msra.mxu0 0.0
  %457 = vmatprep.subr.mxu0 0.0
  %458 = vmatpush1.msra.mxu0 0.0
  %459 = vmatprep.subr.mxu0 0.0
  %460 = vmatpush1.msra.mxu0 0.0
  %461 = vmatprep.subr.mxu0 0.0
  %462 = vmatpush1.msra.mxu0 0.0
  %463 = vmatprep.subr.mxu0 0.0
  %464 = vmatpush1.msra.mxu0 0.0
  %465 = vmatprep.subr.mxu0 0.0
  %466 = vmatpush1.msra.mxu0 0.0
  %467 = vmatprep.subr.mxu0 0.0
  %468 = vmatpush1.msra.mxu0 0.0
  %469 = vmatprep.subr.mxu0 0.0
  %470 = vmatpush1.msra.mxu0 0.0
  %471 = vmatprep.subr.mxu0 0.0
  %472 = vmatpush1.msra.mxu0 0.0
  %473 = vmatprep.subr.mxu0 0.0
  %474 = vmatpush1.msra.mxu0 0.0
  %475 = vmatprep.subr.mxu0 0.0
  %476 = vmatpush1.msra.mxu0 0.0
  %477 = vmatprep.subr.mxu0 0.0
  %478 = vmatpush1.msra.mxu0 0.0
  %479 = vmatprep.subr.mxu0 0.0
  %480 = vmatpush1.msra.mxu0 0.0
  %481 = vmatprep.subr.mxu0 0.0
  %482 = vmatpush1.msra.mxu0 0.0
  %483 = vmatprep.subr.mxu0 0.0
  %484 = vmatpush1.msra.mxu0 0.0
  %485 = vmatprep.subr.mxu0 0.0
  %486 = vmatpush1.msra.mxu0 0.0
  %487 = vmatprep.mubr.f32.mxu0 0.0
  %488 = vmatmul.mubr.f32.gmra.mrb[0].mxu0 %v418
  %v489 = vpop.f32.mrb[0].mxu0
  %v490 = vadd.f32 %v409, %v489
  %v491 = vpop.f32.mrb[0].mxu0
  %492 = vmatprep.mubr.f32.mxu0 0.0
  %493 = vmatmul.mubr.f32.gmra.mrb[0].mxu0 %v421
  %v494 = vpop.f32.mrb[0].mxu0
  %v495 = vadd.f32 %v414, %v494
  %v496 = vpop.f32.mrb[0].mxu0
  %497 = vdwg.mxu0
  %s498 = scalar_lea.vmem %s2, 32
  %v499 = vld [vmem:[%s498] sm:$0xff]
  %v500 = vld [vmem:[%s498 + $0x8] sm:$0xff]
  %v502 = vsel %vm335, %v499, 0
  %v505 = vsel %vm335, %v500, 0
  %507 = vmatprep.subr.mxu0 0.0
  %508 = vmatpush1.msra.mxu0 %v329
  %509 = vmatprep.subr.mxu0 0.0
  %510 = vmatpush1.msra.mxu0 0.0
  %511 = vmatprep.subr.mxu0 0.0
  %512 = vmatpush1.msra.mxu0 0.0
  %513 = vmatprep.subr.mxu0 0.0
  %514 = vmatpush1.msra.mxu0 0.0
  %515 = vmatprep.subr.mxu0 0.0
  %516 = vmatpush1.msra.mxu0 0.0
  %517 = vmatprep.subr.mxu0 0.0
  %518 = vmatpush1.msra.mxu0 0.0
  %519 = vmatprep.subr.mxu0 0.0
  %520 = vmatpush1.msra.mxu0 0.0
  %521 = vmatprep.subr.mxu0 0.0
  %522 = vmatpush1.msra.mxu0 0.0
  %523 = vmatprep.subr.mxu0 0.0
  %524 = vmatpush1.msra.mxu0 0.0
  %525 = vmatprep.subr.mxu0 0.0
  %526 = vmatpush1.msra.mxu0 0.0
  %527 = vmatprep.subr.mxu0 0.0
  %528 = vmatpush1.msra.mxu0 0.0
  %529 = vmatprep.subr.mxu0 0.0
  %530 = vmatpush1.msra.mxu0 0.0
  %531 = vmatprep.subr.mxu0 0.0
  %532 = vmatpush1.msra.mxu0 0.0
  %533 = vmatprep.subr.mxu0 0.0
  %534 = vmatpush1.msra.mxu0 0.0
  %535 = vmatprep.subr.mxu0 0.0
  %536 = vmatpush1.msra.mxu0 0.0
  %537 = vmatprep.subr.mxu0 0.0
  %538 = vmatpush1.msra.mxu0 0.0
  %539 = vmatprep.subr.mxu0 0.0
  %540 = vmatpush1.msra.mxu0 0.0
  %541 = vmatprep.subr.mxu0 0.0
  %542 = vmatpush1.msra.mxu0 0.0
  %543 = vmatprep.subr.mxu0 0.0
  %544 = vmatpush1.msra.mxu0 0.0
  %545 = vmatprep.subr.mxu0 0.0
  %546 = vmatpush1.msra.mxu0 0.0
  %547 = vmatprep.subr.mxu0 0.0
  %548 = vmatpush1.msra.mxu0 0.0
  %549 = vmatprep.subr.mxu0 0.0
  %550 = vmatpush1.msra.mxu0 0.0
  %551 = vmatprep.subr.mxu0 0.0
  %552 = vmatpush1.msra.mxu0 0.0
  %553 = vmatprep.subr.mxu0 0.0
  %554 = vmatpush1.msra.mxu0 0.0
  %555 = vmatprep.subr.mxu0 0.0
  %556 = vmatpush1.msra.mxu0 0.0
  %557 = vmatprep.subr.mxu0 0.0
  %558 = vmatpush1.msra.mxu0 0.0
  %559 = vmatprep.subr.mxu0 0.0
  %560 = vmatpush1.msra.mxu0 0.0
  %561 = vmatprep.subr.mxu0 0.0
  %562 = vmatpush1.msra.mxu0 0.0
  %563 = vmatprep.subr.mxu0 0.0
  %564 = vmatpush1.msra.mxu0 0.0
  %565 = vmatprep.subr.mxu0 0.0
  %566 = vmatpush1.msra.mxu0 0.0
  %567 = vmatprep.subr.mxu0 0.0
  %568 = vmatpush1.msra.mxu0 0.0
  %569 = vmatprep.subr.mxu0 0.0
  %570 = vmatpush1.msra.mxu0 0.0
  %571 = vmatprep.mubr.f32.mxu0 0.0
  %572 = vmatmul.mubr.f32.gmra.mrb[0].mxu0 %v502
  %v573 = vpop.f32.mrb[0].mxu0
  %v574 = vadd.f32 0.0, %v573
  %v575 = vpop.f32.mrb[0].mxu0
  %576 = vmatprep.mubr.f32.mxu0 0.0
  %577 = vmatmul.mubr.f32.gmra.mrb[0].mxu0 %v505
  %v578 = vpop.f32.mrb[0].mxu0
  %v579 = vadd.f32 0.0, %v578
  %v580 = vpop.f32.mrb[0].mxu0
  %581 = vdwg.mxu0
  %v582 = vadd.f32 %v490, %v574
  %v583 = vadd.f32 %v495, %v579
  %v584 = vld [vmem:[%s5] sm:$0xff]
  %v585 = vld [vmem:[%s5 + $0x8] sm:$0xff]
  %v586 = vld [vmem:[%s6] sm:$0xff]
  %v587 = vld [vmem:[%s6 + $0x8] sm:$0xff]
  %588 = vadd.xlane.f32.xlu0 %v582
  %v589 = vpop.xlane.xlu0 %588
  %590 = vadd.xlane.f32.xlu0 %v583
  %v591 = vpop.xlane.xlu0 %590
  %v592 = vmul.f32 %v589, 0.015625
  %v593 = vmul.f32 %v591, 0.015625
  %v594 = vsub.f32 %v582, %v592
  %v595 = vsub.f32 %v583, %v593
  %v596 = vmul.f32 %v594, %v594
  %v597 = vmul.f32 %v595, %v595
  %598 = vadd.xlane.f32.xlu0 %v596
  %v599 = vpop.xlane.xlu0 %598
  %600 = vadd.xlane.f32.xlu0 %v597
  %v601 = vpop.xlane.xlu0 %600
  %v602 = vmul.f32 %v592, %v592
  %v603 = vmul.f32 %v593, %v593
  %v604 = vmul.f32 %v602, 64.0
  %v605 = vmul.f32 %v603, 64.0
  %v606 = vsub.f32 %v599, %v604
  %v607 = vsub.f32 %v601, %v605
  %v608 = vmul.f32 %v606, 0.015625
  %v609 = vmul.f32 %v607, 0.015625
  %v610 = vmax.f32 %v608, 0.0
  %v611 = vmax.f32 %v609, 0.0
  %v612 = vadd.f32 %v610, 1e-05
  %v613 = vadd.f32 %v611, 1e-05
  %v614 = vrsqrt.pop %v612
  %v615 = vrsqrt.pop %v613
  %v616 = vmul.f32 %v584, %v614
  %v617 = vmul.f32 %v585, %v615
  %v618 = vmul.f32 %v592, %v616
  %v619 = vmul.f32 %v593, %v617
  %v620 = vsub.f32 %v586, %v618
  %v621 = vsub.f32 %v587, %v619
  %623 = vset.pattern.permute.xlu0 0
  %624 = vperm.xlu0 %623, %v616
  %v625 = vpop.permute.xlu0 %624
  %628 = vset.pattern.permute.xlu0 0
  %629 = vperm.xlu0 %628, %v617
  %v630 = vpop.permute.xlu0 %629
  %v632 = vmul.f32 %v582, %v625
  %v633 = vmul.f32 %v583, %v630
  %635 = vset.pattern.permute.xlu0 0
  %636 = vperm.xlu0 %635, %v620
  %v637 = vpop.permute.xlu0 %636
  %640 = vset.pattern.permute.xlu0 0
  %641 = vperm.xlu0 %640, %v621
  %v642 = vpop.permute.xlu0 %641
  %v644 = vadd.f32 %v632, %v637
  %v645 = vadd.f32 %v633, %v642
  %v646 = vadd.f32 %v644, %v51
  %v647 = vadd.f32 %v645, %v52
  %v648 = vmax.f32 %v646, 0.0
  %v649 = vmax.f32 %v647, 0.0
  %650 = vst [vmem:[%s7] sm:$0xff] %v648
  %651 = vst [vmem:[%s7 + $0x8] sm:$0xff] %v649
  // Predicated region
  $region30: #{basic_block.1} parent=0 // pred_check
    _
  $region31: #{basic_block.1} parent=0 // pred_check_branch
    %653 = sbr.rel (0) target = $region33
  $region32: #{basic_block.1} parent=0 // pred_region
    _
  $region33: #{basic_block.1} parent=0 // pred_fallthru
    _
  // Predicated region
  $region34: #{basic_block.1} parent=0 // pred_check
    _
  $region35: #{basic_block.1} parent=0 // pred_check_branch
    %655 = sbr.rel (0) target = $region37
  $region36: #{basic_block.1} parent=0 // pred_region
    _
  $region37: #{basic_block.1} parent=0 // pred_fallthru
    _

</llo_original>
